<compile_context>
chip_gen: v7x
topology: tpu7x:2x2x1
jax: 0.10.0
libtpu: 0.0.40
codegen_flags: <defaults>
</compile_context>

<pallas_src>
import functools

import jax
import jax.numpy as jnp
from jax.experimental import pallas as pl
from jax.experimental.pallas import tpu as pltpu

TEMPERATURE = 0.07
_EPS = 1e-12  # matches torch.nn.functional.normalize default eps
_LANE = 128


def _simclr_tile_kernel(adv_ref, a1_ref, a2_ref, out_ref, *, total_rows,
                        inv_temp, mask_tail):
    tb = adv_ref.shape[0]

    adv = adv_ref[...]
    a1 = a1_ref[...]
    a2 = a2_ref[...]

    def rowsum(x, y):
        # Multiply in the input dtype (halves vmul count for bf16 inputs on
        # v6e/v7x; no-op casts for f32), accumulate the row sum in f32.
        return jnp.sum((x * y).astype(jnp.float32), axis=1, keepdims=True)

    # Six row-wise reductions (normalization fused into the dots; no
    # normalized [TB, D] temporaries).
    d12 = rowsum(a1, a2)     # (TB, 1)
    d1a = rowsum(a1, adv)
    d2a = rowsum(a2, adv)
    n1 = rowsum(a1, a1)
    n2 = rowsum(a2, a2)
    na = rowsum(adv, adv)

    # 1 / max(||x||, eps) on (TB, 1) vectors: rsqrt on the EUP, clamped per
    # norm to match torch.nn.functional.normalize semantics.
    inv_eps = jnp.float32(1.0 / _EPS)
    i1 = jnp.minimum(jax.lax.rsqrt(n1), inv_eps)
    i2 = jnp.minimum(jax.lax.rsqrt(n2), inv_eps)
    ia = jnp.minimum(jax.lax.rsqrt(na), inv_eps)

    x0 = d12 * (i1 * i2) * inv_temp   # label 1, weight 1
    x1 = d1a * (i1 * ia) * inv_temp   # label 0, weight 3
    x2 = d2a * (i2 * ia) * inv_temp   # label 0, weight 3

    def softplus_neg_abs(x):  # log(1 + exp(-|x|)), numerically stable
        return jnp.log1p(jnp.exp(-jnp.abs(x)))

    # BCEWithLogits: w * (max(x,0) - x*y + log1p(exp(-|x|)))
    bce0 = jnp.maximum(x0, 0.0) - x0 + softplus_neg_abs(x0)
    bce1 = 3.0 * (jnp.maximum(x1, 0.0) + softplus_neg_abs(x1))
    bce2 = 3.0 * (jnp.maximum(x2, 0.0) + softplus_neg_abs(x2))
    per_row = bce0 + bce1 + bce2                                  # (TB, 1)

    if mask_tail:
        # Ragged last tile: mask padded/stale rows with a select (NOT a
        # multiply) so NaN/Inf from garbage rows cannot propagate.
        rows = jax.lax.broadcasted_iota(jnp.int32, (tb, 1), 0)
        valid = total_rows - pl.program_id(0) * tb
        per_row = jnp.where(rows < valid, per_row, 0.0)

    out_ref[0, 0] = jnp.sum(per_row)


def _tile_and_vmem(b, d, itemsize):
    """Generation-aware tile rows + scoped-VMEM budget.

    Per-input block target ~= physical_VMEM / 16, capped at 8 MiB:
      v5e/v6e (128 MiB) -> 8 MiB blocks, v7x (64 MiB) -> 4 MiB blocks.
    vmem_limit covers 3 inputs x 2 pipeline buffers + headroom.
    """
    try:
        phys_vmem = int(pltpu.get_tpu_info().vmem_capacity_bytes)
    except Exception:  # conservative fallback if query unavailable
        phys_vmem = 64 * 1024 * 1024

    per_block_target = min(phys_vmem // 16, 8 * 1024 * 1024)
    row_bytes = max(1, d * itemsize)

    tb = min(b, max(8, per_block_target // row_bytes))
    tb = max(8, (tb // 8) * 8)
    if b <= tb:
        tb = b  # single full-extent tile (always layout-legal)

    block_bytes = tb * row_bytes
    needed = 3 * 2 * block_bytes + 4 * 1024 * 1024  # + output/internal slack
    vmem_limit = max(needed, 32 * 1024 * 1024)
    vmem_limit = min(vmem_limit, phys_vmem - 8 * 1024 * 1024)
    return tb, int(vmem_limit)


def simclr_loss(adv_pc_logits, aug_pc1_logits, aug_pc2_logits,
                temperature=TEMPERATURE):
    """Pallas implementation of simCLRLoss.forward. Returns a scalar f32."""
    assert adv_pc_logits.shape == aug_pc1_logits.shape == aug_pc2_logits.shape
    assert adv_pc_logits.ndim == 2
    b, d = adv_pc_logits.shape

    # Lane-pad the feature axis to a multiple of 128.  Zero columns change
    # neither the L2 norms nor the dot products, so semantics are preserved.
    d_pad = ((d + _LANE - 1) // _LANE) * _LANE
    if d_pad != d:
        pad = ((0, 0), (0, d_pad - d))
        adv_pc_logits = jnp.pad(adv_pc_logits, pad)
        aug_pc1_logits = jnp.pad(aug_pc1_logits, pad)
        aug_pc2_logits = jnp.pad(aug_pc2_logits, pad)

    itemsize = jnp.dtype(adv_pc_logits.dtype).itemsize
    tb, vmem_limit = _tile_and_vmem(b, d_pad, itemsize)
    num_tiles = pl.cdiv(b, tb)
    mask_tail = (b % tb) != 0  # statically skip the mask for exact tilings

    kernel = functools.partial(
        _simclr_tile_kernel, total_rows=b, inv_temp=1.0 / float(temperature),
        mask_tail=mask_tail)

    in_spec = pl.BlockSpec((tb, d_pad), lambda i: (i, 0))
    partials = pl.pallas_call(
        kernel,
        grid=(num_tiles,),
        out_shape=jax.ShapeDtypeStruct((num_tiles, 1), jnp.float32),
        in_specs=[in_spec, in_spec, in_spec],
        out_specs=pl.BlockSpec((1, 1), lambda i: (i, 0),
                               memory_space=pltpu.MemorySpace.SMEM),
        compiler_params=pltpu.CompilerParams(
            dimension_semantics=("parallel",),
            vmem_limit_bytes=vmem_limit),
        cost_estimate=pl.CostEstimate(
            flops=12 * b * d_pad,        # 6 fused mul+add reductions
            transcendentals=9 * b,       # 3x rsqrt + 3x exp + 3x log1p per row
            bytes_accessed=3 * b * d_pad * itemsize + num_tiles * 4),
    )(adv_pc_logits, aug_pc1_logits, aug_pc2_logits)

    # Mean over all B*3 BCE elements.
    return jnp.sum(partials) / (3.0 * b)


def _reference_loss(adv, a1, a2, temperature=TEMPERATURE):
    """Pure-JAX reference mirroring the PyTorch module."""
    def l2norm(x):
        return x / jnp.maximum(jnp.linalg.norm(x, axis=1, keepdims=True), _EPS)

    a1n, a2n, advn = l2norm(a1), l2norm(a2), l2norm(adv)
    qk = jnp.sum(a1n * a2n, axis=1)
    qi1 = jnp.sum(a1n * advn, axis=1)
    qi2 = jnp.sum(a2n * advn, axis=1)
    logits = jnp.stack([qk, qi1, qi2], axis=1) / temperature
    labels = jnp.concatenate(
        [jnp.ones((logits.shape[0], 1)), jnp.zeros((logits.shape[0], 2))],
        axis=1)
    weights = jnp.concatenate(
        [jnp.ones((logits.shape[0], 1)), 3.0 * jnp.ones((logits.shape[0], 2))],
        axis=1)
    per_elem = weights * (jnp.maximum(logits, 0.0) - logits * labels
                          + jnp.log1p(jnp.exp(-jnp.abs(logits))))
    return jnp.mean(per_elem)


if __name__ == "__main__":
    key = jax.random.PRNGKey(0)
    k1, k2, k3, k4, k5, k6 = jax.random.split(key, 6)

    # Small case (single tile, lane-padded D=32 -> 128).
    B, D = 8, 32
    adv = jax.random.normal(k1, (B, D), dtype=jnp.float32)
    aug1 = jax.random.normal(k2, (B, D), dtype=jnp.float32)
    aug2 = jax.random.normal(k3, (B, D), dtype=jnp.float32)

    loss = simclr_loss(adv, aug1, aug2)
    jax.block_until_ready(loss)
    ref = _reference_loss(adv, aug1, aug2)
    assert jnp.allclose(loss, ref, rtol=1e-5, atol=1e-5), (loss, ref)

    # Ragged multi-tile path is exercised only when B exceeds one tile; at
    # these small test shapes it collapses to a single full-extent tile, which
    # is the intended behavior.
    B2, D2 = 20, 128
    adv2 = jax.random.normal(k4, (B2, D2), dtype=jnp.float32)
    aug1b = jax.random.normal(k5, (B2, D2), dtype=jnp.float32)
    aug2b = jax.random.normal(k6, (B2, D2), dtype=jnp.float32)

    loss2 = simclr_loss(adv2, aug1b, aug2b)
    jax.block_until_ready(loss2)
    ref2 = _reference_loss(adv2, aug1b, aug2b)
    assert jnp.allclose(loss2, ref2, rtol=1e-5, atol=1e-5), (loss2, ref2)

    print("KERNEL_OK")
</pallas_src>

<mosaic_0001>
module attributes {stable_mosaic.version = 11 : i64} {
  func.func @_simclr_tile_kernel(%arg0: i32, %arg1: memref<8x128xf32, #tpu.memory_space<vmem>>, %arg2: memref<8x128xf32, #tpu.memory_space<vmem>>, %arg3: memref<8x128xf32, #tpu.memory_space<vmem>>, %arg4: memref<1x1xf32, #tpu.memory_space<smem>>) attributes {dimension_semantics = [#tpu.dimension_semantics<parallel>], iteration_bounds = array<i64: 1>, scalar_prefetch = 0 : i64, scratch_operands = 0 : i64, tpu.core_type = #tpu.core_type<tc>, window_params = [{transform_indices = @transform_0, window_bounds = array<i64: 8, 128>}, {transform_indices = @transform_1, window_bounds = array<i64: 8, 128>}, {transform_indices = @transform_2, window_bounds = array<i64: 8, 128>}, {transform_indices = @transform_3, window_bounds = array<i64: 1, 1>}]} {
    %c0 = arith.constant 0 : index
    %c0_0 = arith.constant 0 : index
    %0 = vector.load %arg1[%c0, %c0_0] : memref<8x128xf32, #tpu.memory_space<vmem>>, vector<8x128xf32>
    %c0_1 = arith.constant 0 : index
    %c0_2 = arith.constant 0 : index
    %1 = vector.load %arg2[%c0_1, %c0_2] : memref<8x128xf32, #tpu.memory_space<vmem>>, vector<8x128xf32>
    %c0_3 = arith.constant 0 : index
    %c0_4 = arith.constant 0 : index
    %2 = vector.load %arg3[%c0_3, %c0_4] : memref<8x128xf32, #tpu.memory_space<vmem>>, vector<8x128xf32>
    %3 = arith.mulf %1, %2 : vector<8x128xf32>
    %cst = arith.constant dense<0.000000e+00> : vector<8xf32>
    %4 = vector.multi_reduction <add>, %3, %cst [1] : vector<8x128xf32> to vector<8xf32>
    %5 = vector.shape_cast %4 : vector<8xf32> to vector<8x1xf32>
    %6 = arith.mulf %1, %0 : vector<8x128xf32>
    %cst_5 = arith.constant dense<0.000000e+00> : vector<8xf32>
    %7 = vector.multi_reduction <add>, %6, %cst_5 [1] : vector<8x128xf32> to vector<8xf32>
    %8 = vector.shape_cast %7 : vector<8xf32> to vector<8x1xf32>
    %9 = arith.mulf %2, %0 : vector<8x128xf32>
    %cst_6 = arith.constant dense<0.000000e+00> : vector<8xf32>
    %10 = vector.multi_reduction <add>, %9, %cst_6 [1] : vector<8x128xf32> to vector<8xf32>
    %11 = vector.shape_cast %10 : vector<8xf32> to vector<8x1xf32>
    %12 = arith.mulf %1, %1 : vector<8x128xf32>
    %cst_7 = arith.constant dense<0.000000e+00> : vector<8xf32>
    %13 = vector.multi_reduction <add>, %12, %cst_7 [1] : vector<8x128xf32> to vector<8xf32>
    %14 = vector.shape_cast %13 : vector<8xf32> to vector<8x1xf32>
    %15 = arith.mulf %2, %2 : vector<8x128xf32>
    %cst_8 = arith.constant dense<0.000000e+00> : vector<8xf32>
    %16 = vector.multi_reduction <add>, %15, %cst_8 [1] : vector<8x128xf32> to vector<8xf32>
    %17 = vector.shape_cast %16 : vector<8xf32> to vector<8x1xf32>
    %18 = arith.mulf %0, %0 : vector<8x128xf32>
    %cst_9 = arith.constant dense<0.000000e+00> : vector<8xf32>
    %19 = vector.multi_reduction <add>, %18, %cst_9 [1] : vector<8x128xf32> to vector<8xf32>
    %20 = vector.shape_cast %19 : vector<8xf32> to vector<8x1xf32>
    %21 = math.rsqrt %14 : vector<8x1xf32>
    %cst_10 = arith.constant 9.99999995E+11 : f32
    %22 = vector.broadcast %cst_10 : f32 to vector<8x1xf32>
    %23 = arith.minimumf %21, %22 : vector<8x1xf32>
    %24 = math.rsqrt %17 : vector<8x1xf32>
    %cst_11 = arith.constant 9.99999995E+11 : f32
    %25 = vector.broadcast %cst_11 : f32 to vector<8x1xf32>
    %26 = arith.minimumf %24, %25 : vector<8x1xf32>
    %27 = math.rsqrt %20 : vector<8x1xf32>
    %cst_12 = arith.constant 9.99999995E+11 : f32
    %28 = vector.broadcast %cst_12 : f32 to vector<8x1xf32>
    %29 = arith.minimumf %27, %28 : vector<8x1xf32>
    %30 = arith.mulf %23, %26 : vector<8x1xf32>
    %31 = arith.mulf %5, %30 : vector<8x1xf32>
    %cst_13 = arith.constant 14.2857141 : f32
    %32 = vector.broadcast %cst_13 : f32 to vector<8x1xf32>
    %33 = arith.mulf %31, %32 : vector<8x1xf32>
    %34 = arith.mulf %23, %29 : vector<8x1xf32>
    %35 = arith.mulf %8, %34 : vector<8x1xf32>
    %cst_14 = arith.constant 14.2857141 : f32
    %36 = vector.broadcast %cst_14 : f32 to vector<8x1xf32>
    %37 = arith.mulf %35, %36 : vector<8x1xf32>
    %38 = arith.mulf %26, %29 : vector<8x1xf32>
    %39 = arith.mulf %11, %38 : vector<8x1xf32>
    %cst_15 = arith.constant 14.2857141 : f32
    %40 = vector.broadcast %cst_15 : f32 to vector<8x1xf32>
    %41 = arith.mulf %39, %40 : vector<8x1xf32>
    %cst_16 = arith.constant 0.000000e+00 : f32
    %42 = vector.broadcast %cst_16 : f32 to vector<8x1xf32>
    %43 = arith.maximumf %33, %42 : vector<8x1xf32>
    %44 = arith.subf %43, %33 : vector<8x1xf32>
    %45 = math.absf %33 : vector<8x1xf32>
    %cst_17 = arith.constant 0.000000e+00 : f32
    %46 = vector.broadcast %cst_17 : f32 to vector<8x1xf32>
    %47 = arith.subf %46, %45 : vector<8x1xf32>
    %48 = math.exp %47 : vector<8x1xf32>
    %49 = math.log1p %48 : vector<8x1xf32>
    %50 = arith.addf %44, %49 : vector<8x1xf32>
    %cst_18 = arith.constant 0.000000e+00 : f32
    %51 = vector.broadcast %cst_18 : f32 to vector<8x1xf32>
    %52 = arith.maximumf %37, %51 : vector<8x1xf32>
    %53 = math.absf %37 : vector<8x1xf32>
    %cst_19 = arith.constant 0.000000e+00 : f32
    %54 = vector.broadcast %cst_19 : f32 to vector<8x1xf32>
    %55 = arith.subf %54, %53 : vector<8x1xf32>
    %56 = math.exp %55 : vector<8x1xf32>
    %57 = math.log1p %56 : vector<8x1xf32>
    %58 = arith.addf %52, %57 : vector<8x1xf32>
    %cst_20 = arith.constant 3.000000e+00 : f32
    %59 = vector.broadcast %cst_20 : f32 to vector<8x1xf32>
    %60 = arith.mulf %59, %58 : vector<8x1xf32>
    %cst_21 = arith.constant 0.000000e+00 : f32
    %61 = vector.broadcast %cst_21 : f32 to vector<8x1xf32>
    %62 = arith.maximumf %41, %61 : vector<8x1xf32>
    %63 = math.absf %41 : vector<8x1xf32>
    %cst_22 = arith.constant 0.000000e+00 : f32
    %64 = vector.broadcast %cst_22 : f32 to vector<8x1xf32>
    %65 = arith.subf %64, %63 : vector<8x1xf32>
    %66 = math.exp %65 : vector<8x1xf32>
    %67 = math.log1p %66 : vector<8x1xf32>
    %68 = arith.addf %62, %67 : vector<8x1xf32>
    %cst_23 = arith.constant 3.000000e+00 : f32
    %69 = vector.broadcast %cst_23 : f32 to vector<8x1xf32>
    %70 = arith.mulf %69, %68 : vector<8x1xf32>
    %71 = arith.addf %50, %60 : vector<8x1xf32>
    %72 = arith.addf %71, %70 : vector<8x1xf32>
    %73 = vector.shape_cast %72 : vector<8x1xf32> to vector<1x8x1xf32>
    %cst_24 = arith.constant dense<0.000000e+00> : vector<1xf32>
    %74 = vector.multi_reduction <add>, %73, %cst_24 [1, 2] : vector<1x8x1xf32> to vector<1xf32>
    %75 = vector.shape_cast %74 : vector<1xf32> to vector<1x1x1xf32>
    %76 = vector.extract %75[0, 0, 0] : f32 from vector<1x1x1xf32>
    %c0_25 = arith.constant 0 : index
    %c0_26 = arith.constant 0 : index
    %77 = memref.load %arg4[%c0_25, %c0_26] : memref<1x1xf32, #tpu.memory_space<smem>>
    memref.store %76, %arg4[%c0_25, %c0_26] : memref<1x1xf32, #tpu.memory_space<smem>>
    return
  }
  func.func @transform_0(%arg0: i32) -> (i32, i32) {
    %c0_i32 = arith.constant 0 : i32
    %c0_i32_0 = arith.constant 0 : i32
    return %arg0, %c0_i32 : i32, i32
  }
  func.func @transform_1(%arg0: i32) -> (i32, i32) {
    %c0_i32 = arith.constant 0 : i32
    %c0_i32_0 = arith.constant 0 : i32
    return %arg0, %c0_i32 : i32, i32
  }
  func.func @transform_2(%arg0: i32) -> (i32, i32) {
    %c0_i32 = arith.constant 0 : i32
    %c0_i32_0 = arith.constant 0 : i32
    return %arg0, %c0_i32 : i32, i32
  }
  func.func @transform_3(%arg0: i32) -> (i32, i32) {
    %c0_i32 = arith.constant 0 : i32
    %c0_i32_0 = arith.constant 0 : i32
    return %arg0, %c0_i32 : i32, i32
  }
}

</mosaic_0001>

<llo_original>
// kernel: tpu_custom_call.1
$region0: #{tpu_custom_call.1}
  #allocation0 [shape = 'u32[]', space=smem, size = 0x4, offset = 0x4, fixed_abs, tag = 'smem constant byte address 0x4 - core index']
  #allocation1 [shape = 'u32[144,128]{1,0:T(1,128)}', space=vmem, size = 0x12000, scoped, tag = 'internal scratch']
  %s0 = inlined_call_operand.hbm [shape: f32[8,128], index: 0, kind: input, shape index: {}]
  %s1 = inlined_call_operand.hbm [shape: f32[8,128], index: 1, kind: input, shape index: {}]
  %s2 = inlined_call_operand.hbm [shape: f32[8,128], index: 2, kind: input, shape index: {}]
  %s3 = inlined_call_operand.hbm [shape: f32[1,1], index: 3, kind: output, shape index: {}]
  %s4 = sld [smem:[#allocation0]]
  $region34: #{tpu_custom_call.1} parent=0
    _
  %s6 = ssub.s32 1, %s4
  %s7 = scalar_select 0, %s6, %s4
  $region1: #{tpu_custom_call.1} parent=0
    #allocation2 [shape = 'u8[4096]{0}', space=vmem, size = 0x1000, scoped, tag = 'input window, operand 0, single buffered']
    #allocation3 [shape = 's32[1]{0}', space=sflag, size = 0x4, scoped, tag = 'scoped memory for tpu_custom_call.1']
    #allocation4 [shape = 's32[1]{0}', space=sflag, size = 0x4, scoped, tag = 'scoped memory for tpu_custom_call.1']
    #allocation5 [shape = 'u8[4096]{0}', space=vmem, size = 0x1000, scoped, tag = 'input window, operand 1, single buffered']
    #allocation6 [shape = 's32[1]{0}', space=sflag, size = 0x4, scoped, tag = 'scoped memory for tpu_custom_call.1']
    #allocation7 [shape = 'u8[4096]{0}', space=vmem, size = 0x1000, scoped, tag = 'input window, operand 2, single buffered']
    #allocation8 [shape = 'u8[512]{0}', space=smem, size = 0x200, scoped, tag = 'output window, operand 0, single buffered']
    %8 = vsyncpa [#allocation3], 0
    %9 = vsyncpa [#allocation6], 0
    %10 = vsyncpa [#allocation4], 0
    // Predicated region
    $region2: #{tpu_custom_call.1} parent=1 // pred_check
      _
    $region3: #{tpu_custom_call.1} parent=1 // pred_check_branch
      %12 = sbr.rel (0) target = $region5
    $region4: #{tpu_custom_call.1} parent=1 // pred_region
      %s14 = ssub.s32 128, 128
      %15 = vsyncadd [#allocation3], %s14
      %s17 = sshll.u32 [#allocation2], 4
      %s18 = int_to_ptr.vmem [resolvable:$true] %s17
      %20 = dma.hbm_to_vmem [thread:$0]  %s0, 128, %s18, [#allocation3]
    $region5: #{tpu_custom_call.1} parent=1 // pred_fallthru
      _
    // Predicated region
    $region6: #{tpu_custom_call.1} parent=1 // pred_check
      _
    $region7: #{tpu_custom_call.1} parent=1 // pred_check_branch
      %22 = sbr.rel (0) target = $region9
    $region8: #{tpu_custom_call.1} parent=1 // pred_region
      %s24 = ssub.s32 128, 128
      %25 = vsyncadd [#allocation6], %s24
      %s27 = sshll.u32 [#allocation5], 4
      %s28 = int_to_ptr.vmem [resolvable:$true] %s27
      %30 = dma.hbm_to_vmem [thread:$0]  %s1, 128, %s28, [#allocation6]
    $region9: #{tpu_custom_call.1} parent=1 // pred_fallthru
      _
    // Predicated region
    $region10: #{tpu_custom_call.1} parent=1 // pred_check
      _
    $region11: #{tpu_custom_call.1} parent=1 // pred_check_branch
      %32 = sbr.rel (0) target = $region13
    $region12: #{tpu_custom_call.1} parent=1 // pred_region
      %s34 = ssub.s32 128, 128
      %35 = vsyncadd [#allocation6], %s34
      %s37 = sshll.u32 [#allocation7], 4
      %s38 = int_to_ptr.vmem [resolvable:$true] %s37
      %40 = dma.hbm_to_vmem [thread:$0]  %s2, 128, %s38, [#allocation6]
    $region13: #{tpu_custom_call.1} parent=1 // pred_fallthru
      _
    // Predicated region
    $region14: #{tpu_custom_call.1} parent=1 // pred_check
      _
    $region15: #{tpu_custom_call.1} parent=1 // pred_check_branch
      %42 = sbr.rel (0) target = $region17
    $region16: #{tpu_custom_call.1} parent=1 // pred_region
      %43 = dma.done [#allocation3], 128
    $region17: #{tpu_custom_call.1} parent=1 // pred_fallthru
      _
    // Predicated region
    $region18: #{tpu_custom_call.1} parent=1 // pred_check
      _
    $region19: #{tpu_custom_call.1} parent=1 // pred_check_branch
      %45 = sbr.rel (0) target = $region21
    $region20: #{tpu_custom_call.1} parent=1 // pred_region
      %46 = dma.done [#allocation6], 128
    $region21: #{tpu_custom_call.1} parent=1 // pred_fallthru
      _
    // Predicated region
    $region22: #{tpu_custom_call.1} parent=1 // pred_check
      _
    $region23: #{tpu_custom_call.1} parent=1 // pred_check_branch
      %48 = sbr.rel (0) target = $region25
    $region24: #{tpu_custom_call.1} parent=1 // pred_region
      %49 = dma.done [#allocation6], 128
    $region25: #{tpu_custom_call.1} parent=1 // pred_fallthru
      _
    %v50 = vld [vmem:[#allocation2] sm:$0xff]
    %v51 = vld [vmem:[#allocation5] sm:$0xff]
    %v52 = vld [vmem:[#allocation7] sm:$0xff]
    %v53 = vmul.f32 %v51, %v52
    %54 = vadd.xlane.f32.xlu0 %v53
    %v55 = vpop.xlane.xlu0 %54
    %v56 = vmul.f32 %v51, %v50
    %57 = vadd.xlane.f32.xlu0 %v56
    %v58 = vpop.xlane.xlu0 %57
    %v59 = vmul.f32 %v52, %v50
    %60 = vadd.xlane.f32.xlu0 %v59
    %v61 = vpop.xlane.xlu0 %60
    %v62 = vmul.f32 %v51, %v51
    %63 = vadd.xlane.f32.xlu0 %v62
    %v64 = vpop.xlane.xlu0 %63
    %v65 = vmul.f32 %v52, %v52
    %66 = vadd.xlane.f32.xlu0 %v65
    %v67 = vpop.xlane.xlu0 %66
    %v68 = vmul.f32 %v50, %v50
    %69 = vadd.xlane.f32.xlu0 %v68
    %v70 = vpop.xlane.xlu0 %69
    %v71 = vrsqrt.pop %v64
    %v72 = vmin.f32 %v71, 1e+12
    %v73 = vrsqrt.pop %v67
    %v74 = vmin.f32 %v73, 1e+12
    %v75 = vrsqrt.pop %v70
    %v76 = vmin.f32 %v75, 1e+12
    %v77 = vmul.f32 %v72, %v74
    %v78 = vmul.f32 %v55, %v77
    %v79 = vmul.f32 %v78, 14.285714
    %v80 = vmul.f32 %v72, %v76
    %v81 = vmul.f32 %v58, %v80
    %v82 = vmul.f32 %v81, 14.285714
    %v83 = vmul.f32 %v74, %v76
    %v84 = vmul.f32 %v61, %v83
    %v85 = vmul.f32 %v84, 14.285714
    %v86 = vmax.f32 %v79, 0.0
    %v87 = vsub.f32 %v86, %v79
    %v88 = vand.u32 2147483647, %v79
    %v89 = vsub.f32 0.0, %v88
    %v90 = vmul.f32 %v89, 1.442695
    %v91 = vpow.pop %v90
    %v92 = vadd.f32 %v91, 1.0
    %v93 = vlog2.pop %v92
    %v94 = vmul.f32 %v93, 0.6931472
    %v95 = vmul.f32 -0.5, %v91
    %v96 = vadd.f32 %v95, 1.0
    %v97 = vmul.f32 %v96, %v91
    %v98 = vand.u32 2147483647, %v91
    %vm99 = vcmp.lt.f32.partialorder %v98, 0.0004427343
    %v100 = vsel %vm99, %v97, %v94
    %v101 = vadd.f32 %v87, %v100
    %v102 = vmax.f32 %v82, 0.0
    %v103 = vand.u32 2147483647, %v82
    %v104 = vsub.f32 0.0, %v103
    %v105 = vmul.f32 %v104, 1.442695
    %v106 = vpow.pop %v105
    %v107 = vadd.f32 %v106, 1.0
    %v108 = vlog2.pop %v107
    %v109 = vmul.f32 %v108, 0.6931472
    %v110 = vmul.f32 -0.5, %v106
    %v111 = vadd.f32 %v110, 1.0
    %v112 = vmul.f32 %v111, %v106
    %v113 = vand.u32 2147483647, %v106
    %vm114 = vcmp.lt.f32.partialorder %v113, 0.0004427343
    %v115 = vsel %vm114, %v112, %v109
    %v116 = vadd.f32 %v102, %v115
    %v117 = vmul.f32 %v116, 3.0
    %v118 = vmax.f32 %v85, 0.0
    %v119 = vand.u32 2147483647, %v85
    %v120 = vsub.f32 0.0, %v119
    %v121 = vmul.f32 %v120, 1.442695
    %v122 = vpow.pop %v121
    %v123 = vadd.f32 %v122, 1.0
    %v124 = vlog2.pop %v123
    %v125 = vmul.f32 %v124, 0.6931472
    %v126 = vmul.f32 -0.5, %v122
    %v127 = vadd.f32 %v126, 1.0
    %v128 = vmul.f32 %v127, %v122
    %v129 = vand.u32 2147483647, %v122
    %vm130 = vcmp.lt.f32.partialorder %v129, 0.0004427343
    %v131 = vsel %vm130, %v128, %v125
    %v132 = vadd.f32 %v118, %v131
    %v133 = vmul.f32 %v132, 3.0
    %v134 = vadd.f32 %v101, %v117
    %v135 = vadd.f32 %v134, %v133
    %vm136 = vcmask 7168
    %v137 = vsel %vm136, %v135, 0.0
    %138 = vadd.xlane.f32.xlu0 %v137
    %v139 = vpop.xlane.xlu0 %138
    %v140 = vrot.slane %v139, 4
    %v141 = vadd.f32 %v139, %v140
    %v142 = vrot.slane %v141, 2
    %v143 = vadd.f32 %v141, %v142
    %v144 = vrot.slane %v143, 1
    %v145 = vadd.f32 %v143, %v144
    %s146 = vtos %v145
    %s147 = scalar_lea.smem [#allocation8], 0
    %148 = sst [smem:[%s147]] %s146
    // Predicated region
    $region26: #{tpu_custom_call.1} parent=1 // pred_check
      _
    $region27: #{tpu_custom_call.1} parent=1 // pred_check_branch
      %150 = sbr.rel (0) target = $region29
    $region28: #{tpu_custom_call.1} parent=1 // pred_region
      %s152 = ssub.s32 16, 16
      %153 = vsyncadd [#allocation4], %s152
      %156 = dma.smem_to_hbm [#allocation8], 16, %s3, [#allocation4]
    $region29: #{tpu_custom_call.1} parent=1 // pred_fallthru
      _
    // Predicated region
    $region30: #{tpu_custom_call.1} parent=1 // pred_check
      _
    $region31: #{tpu_custom_call.1} parent=1 // pred_check_branch
      %158 = sbr.rel (0) target = $region33
    $region32: #{tpu_custom_call.1} parent=1 // pred_region
      %159 = dma.done [#allocation4], 16
    $region33: #{tpu_custom_call.1} parent=1 // pred_fallthru
      _
    %160 = sfence
    %161 = vsyncpa [#allocation3], 1
    %162 = vsyncpa [#allocation6], 1
    %163 = vsyncpa [#allocation4], 1

</llo_original>
